<compile_context>
chip_gen: v5e
topology: v5e:2x2
jax: 0.10.0
libtpu: 0.0.40
codegen_flags: <defaults>
</compile_context>

<pallas_src>
import functools

import jax
import jax.numpy as jnp
from jax.experimental import pallas as pl
from jax.experimental.pallas import tpu as pltpu

_MAX_T_CHUNK = 16  # max timesteps per grid step (bounds static unroll / regs)


def _lstm_recurrent_kernel(xg_ref, whh_ref, y_ref, h_scr, c_scr, *,
                           hidden_size, t_chunk):
    """Process t_chunk timesteps of the LSTM recurrence.

    xg_ref:  (B, T_CHUNK, 4H)  precomputed x @ W_ih^T + bias, gate order [i,f,o,g]
    whh_ref: (H, 4H)           hidden->gates weights (transposed, reordered)
    y_ref:   (B, T_CHUNK, H)   output hidden states for this chunk
    h_scr:   (B, H)            hidden-state carry (VMEM, persists across grid)
    c_scr:   (B, H)            cell-state carry   (VMEM, persists across grid)
    """
    H = hidden_size

    @pl.when(pl.program_id(0) == 0)
    def _():
        h_scr[...] = jnp.zeros_like(h_scr)
        c_scr[...] = jnp.zeros_like(c_scr)

    whh = whh_ref[...]          # resident for the whole chunk (constant index_map)
    h = h_scr[...]              # carry h/c in vregs across the unrolled steps
    c = c_scr[...]

    for k in range(t_chunk):    # static unroll; all ref indices are static
        # gates = xg_t + h_prev @ W_hh^T      (gate order [i, f, o, g])
        gates = xg_ref[:, k, :] + jnp.dot(
            h, whh, preferred_element_type=jnp.float32)
        # one EUP pass over the 3H sigmoid lanes, one over the H tanh lanes
        ifo = jax.nn.sigmoid(gates[:, :3 * H])
        g_g = jnp.tanh(gates[:, 3 * H:])
        i_g = ifo[:, 0 * H:1 * H]
        f_g = ifo[:, 1 * H:2 * H]
        o_g = ifo[:, 2 * H:3 * H]
        c = f_g * c + i_g * g_g
        h = o_g * jnp.tanh(c)
        y_ref[:, k, :] = h.astype(y_ref.dtype)

    h_scr[...] = h
    c_scr[...] = c


def _reorder_gates(w, H):
    """Permute the leading 4H axis from PyTorch order [i,f,g,o] to [i,f,o,g]."""
    return jnp.concatenate([w[0 * H:2 * H], w[3 * H:4 * H], w[2 * H:3 * H]],
                           axis=0)


@functools.partial(jax.jit, static_argnames=("hidden_size",))
def lstm_forward(x, w_ih, w_hh, b_ih, b_hh, *, hidden_size):
    """x: (batch, seq, input) -> (batch, seq, hidden). Single-layer unidirectional LSTM."""
    B, S, I = x.shape
    H = hidden_size
    assert w_ih.shape == (4 * H, I)
    assert w_hh.shape == (4 * H, H)

    # ---- Reorder gate columns [i,f,g,o] -> [i,f,o,g] (one-time XLA concat). ----
    w_ih_r = _reorder_gates(w_ih.astype(jnp.float32), H)              # (4H, I)
    w_hh_r = _reorder_gates(w_hh.astype(jnp.float32), H)              # (4H, H)
    bias = _reorder_gates((b_ih + b_hh).astype(jnp.float32), H)       # (4H,)

    # ---- Hoisted input projection: one dense matmul over all (B*S) rows. ----
    xg = jnp.dot(x.reshape(B * S, I).astype(jnp.float32),
                 jnp.transpose(w_ih_r),
                 preferred_element_type=jnp.float32) + bias           # (B*S, 4H)
    xg = xg.reshape(B, S, 4 * H)                                      # batch-major

    whh_t = jnp.transpose(w_hh_r)                                     # (H, 4H)

    # ---- Chunk the time axis; pad S if it is not a multiple of the chunk. ----
    t_chunk = min(S, _MAX_T_CHUNK)
    s_pad = ((S + t_chunk - 1) // t_chunk) * t_chunk
    if s_pad != S:
        xg = jnp.pad(xg, ((0, 0), (0, s_pad - S), (0, 0)))
    grid = (s_pad // t_chunk,)

    cost = pl.CostEstimate(
        flops=2 * B * s_pad * H * 4 * H + 12 * B * s_pad * H,
        transcendentals=B * s_pad * 5 * H,
        bytes_accessed=4 * (B * s_pad * 4 * H + B * s_pad * H + H * 4 * H),
    )

    y = pl.pallas_call(
        functools.partial(_lstm_recurrent_kernel,
                          hidden_size=H, t_chunk=t_chunk),
        out_shape=jax.ShapeDtypeStruct((B, s_pad, H), jnp.float32),
        grid_spec=pltpu.PrefetchScalarGridSpec(
            num_scalar_prefetch=0,
            grid=grid,
            in_specs=[
                # xg: one time-chunk per grid step, batch-major (no transposes)
                pl.BlockSpec((B, t_chunk, 4 * H), lambda t: (0, t, 0)),
                # W_hh^T: constant index map -> DMA'd once, stays resident
                pl.BlockSpec((H, 4 * H), lambda t: (0, 0)),
            ],
            out_specs=pl.BlockSpec((B, t_chunk, H), lambda t: (0, t, 0)),
            scratch_shapes=[
                pltpu.VMEM((B, H), jnp.float32),  # h carry
                pltpu.VMEM((B, H), jnp.float32),  # c carry
            ],
        ),
        compiler_params=pltpu.CompilerParams(
            # the time axis carries the recurrence -> must run sequentially
            dimension_semantics=("arbitrary",),
        ),
        cost_estimate=cost,
    )(xg, whh_t)

    if s_pad != S:
        y = y[:, :S, :]
    return y


def lstm_reference(x, w_ih, w_hh, b_ih, b_hh, hidden_size):
    """Pure-JAX reference (lax.scan) matching nn.LSTM semantics (gate order [i,f,g,o])."""
    B, S, I = x.shape
    H = hidden_size
    x_tm = jnp.transpose(x, (1, 0, 2)).astype(jnp.float32)
    bias = (b_ih + b_hh).astype(jnp.float32)

    def step(carry, x_t):
        h, c = carry
        gates = x_t @ w_ih.T + h @ w_hh.T + bias
        i = jax.nn.sigmoid(gates[:, 0 * H:1 * H])
        f = jax.nn.sigmoid(gates[:, 1 * H:2 * H])
        g = jnp.tanh(gates[:, 2 * H:3 * H])
        o = jax.nn.sigmoid(gates[:, 3 * H:4 * H])
        c_new = f * c + i * g
        h_new = o * jnp.tanh(c_new)
        return (h_new, c_new), h_new

    h0 = jnp.zeros((B, H), jnp.float32)
    c0 = jnp.zeros((B, H), jnp.float32)
    _, y_tm = jax.lax.scan(step, (h0, c0), x_tm)
    return jnp.transpose(y_tm, (1, 0, 2))


if __name__ == "__main__":
    # Small shapes consistent with the module's forward: (batch, seq, input_size)
    B, S, I, H = 2, 8, 50, 32

    key = jax.random.PRNGKey(0)
    kx, k1, k2, k3, k4 = jax.random.split(key, 5)

    # Deterministic parameter init (PyTorch-style uniform(-1/sqrt(H), 1/sqrt(H))).
    bound = 1.0 / (H ** 0.5)
    x = jax.random.normal(kx, (B, S, I), jnp.float32)
    w_ih = jax.random.uniform(k1, (4 * H, I), jnp.float32, -bound, bound)
    w_hh = jax.random.uniform(k2, (4 * H, H), jnp.float32, -bound, bound)
    b_ih = jax.random.uniform(k3, (4 * H,), jnp.float32, -bound, bound)
    b_hh = jax.random.uniform(k4, (4 * H,), jnp.float32, -bound, bound)

    y = lstm_forward(x, w_ih, w_hh, b_ih, b_hh, hidden_size=H)
    jax.block_until_ready(y)

    y_ref = lstm_reference(x, w_ih, w_hh, b_ih, b_hh, H)
    assert y.shape == (B, S, H)
    assert jnp.allclose(y, y_ref, atol=2e-5, rtol=2e-5), "Pallas LSTM mismatch vs reference"

    print("KERNEL_OK")
</pallas_src>

<mosaic_0001>
module attributes {stable_mosaic.version = 11 : i64} {
  func.func @_lstm_recurrent_kernel(%arg0: i32, %arg1: memref<2x8x128xf32, #tpu.memory_space<vmem>>, %arg2: memref<32x128xf32, #tpu.memory_space<vmem>>, %arg3: memref<2x8x32xf32, #tpu.memory_space<vmem>>, %arg4: memref<2x32xf32, #tpu.memory_space<vmem>>, %arg5: memref<2x32xf32, #tpu.memory_space<vmem>>) attributes {dimension_semantics = [#tpu.dimension_semantics<arbitrary>], iteration_bounds = array<i64: 1>, scalar_prefetch = 0 : i64, scratch_operands = 2 : i64, tpu.core_type = #tpu.core_type<tc>, window_params = [{transform_indices = @transform_0, window_bounds = array<i64: 2, 8, 128>}, {pipeline_mode = #tpu.pipeline_mode<synchronous>, transform_indices = @transform_1, window_bounds = array<i64: 32, 128>}, {transform_indices = @transform_2, window_bounds = array<i64: 2, 8, 32>}]} {
    %c0_i32 = arith.constant 0 : i32
    %0 = arith.cmpi eq, %arg0, %c0_i32 : i32
    %1 = arith.extui %0 : i1 to i32
    %c0_i32_0 = arith.constant 0 : i32
    %2 = arith.cmpi ne, %1, %c0_i32_0 : i32
    scf.if %2 {
      %cst_66 = arith.constant 0.000000e+00 : f32
      %192 = vector.broadcast %cst_66 : f32 to vector<2x32xf32>
      %c0_67 = arith.constant 0 : index
      %c0_68 = arith.constant 0 : index
      %193 = vector.load %arg4[%c0_67, %c0_68] : memref<2x32xf32, #tpu.memory_space<vmem>>, vector<2x32xf32>
      tpu.vector_store %arg4[%c0_67, %c0_68], %192 {strides = array<i32>} : memref<2x32xf32, #tpu.memory_space<vmem>>, vector<2x32xf32>,
      %cst_69 = arith.constant 0.000000e+00 : f32
      %194 = vector.broadcast %cst_69 : f32 to vector<2x32xf32>
      %c0_70 = arith.constant 0 : index
      %c0_71 = arith.constant 0 : index
      %195 = vector.load %arg5[%c0_70, %c0_71] : memref<2x32xf32, #tpu.memory_space<vmem>>, vector<2x32xf32>
      tpu.vector_store %arg5[%c0_70, %c0_71], %194 {strides = array<i32>} : memref<2x32xf32, #tpu.memory_space<vmem>>, vector<2x32xf32>,
    } else {
    }
    %c0 = arith.constant 0 : index
    %c0_1 = arith.constant 0 : index
    %3 = vector.load %arg2[%c0, %c0_1] : memref<32x128xf32, #tpu.memory_space<vmem>>, vector<32x128xf32>
    %c0_2 = arith.constant 0 : index
    %c0_3 = arith.constant 0 : index
    %4 = vector.load %arg4[%c0_2, %c0_3] : memref<2x32xf32, #tpu.memory_space<vmem>>, vector<2x32xf32>
    %c0_4 = arith.constant 0 : index
    %c0_5 = arith.constant 0 : index
    %5 = vector.load %arg5[%c0_4, %c0_5] : memref<2x32xf32, #tpu.memory_space<vmem>>, vector<2x32xf32>
    %c0_6 = arith.constant 0 : index
    %c0_7 = arith.constant 0 : index
    %c0_8 = arith.constant 0 : index
    %6 = vector.load %arg1[%c0_6, %c0_7, %c0_8] : memref<2x8x128xf32, #tpu.memory_space<vmem>>, vector<2x1x128xf32>
    %7 = vector.shape_cast %6 : vector<2x1x128xf32> to vector<2x128xf32>
    %cst = arith.constant dense<0.000000e+00> : vector<2x128xf32>
    %8 = tpu.matmul %4, %3, %cst {dimension_numbers = #tpu.dot_dimension_numbers<[1], [0], [0], [1], [0, 0, 1, 1], [], []>} : vector<2x32xf32>, vector<32x128xf32>, vector<2x128xf32> -> vector<2x128xf32>
    %9 = arith.addf %7, %8 : vector<2x128xf32>
    %10 = vector.extract_strided_slice %9 {offsets = [0, 0], sizes = [2, 96], strides = [1, 1]} : vector<2x128xf32> to vector<2x96xf32>
    %11 = arith.negf %10 : vector<2x96xf32>
    %12 = math.exp %11 : vector<2x96xf32>
    %cst_9 = arith.constant 1.000000e+00 : f32
    %13 = vector.broadcast %cst_9 : f32 to vector<2x96xf32>
    %14 = arith.addf %13, %12 : vector<2x96xf32>
    %15 = arith.divf %13, %14 : vector<2x96xf32>
    %16 = vector.extract_strided_slice %9 {offsets = [0, 96], sizes = [2, 32], strides = [1, 1]} : vector<2x128xf32> to vector<2x32xf32>
    %17 = math.tanh %16 : vector<2x32xf32>
    %18 = vector.extract_strided_slice %15 {offsets = [0, 0], sizes = [2, 32], strides = [1, 1]} : vector<2x96xf32> to vector<2x32xf32>
    %19 = vector.extract_strided_slice %15 {offsets = [0, 32], sizes = [2, 32], strides = [1, 1]} : vector<2x96xf32> to vector<2x32xf32>
    %20 = vector.extract_strided_slice %15 {offsets = [0, 64], sizes = [2, 32], strides = [1, 1]} : vector<2x96xf32> to vector<2x32xf32>
    %21 = arith.mulf %19, %5 : vector<2x32xf32>
    %22 = arith.mulf %18, %17 : vector<2x32xf32>
    %23 = arith.addf %21, %22 : vector<2x32xf32>
    %24 = math.tanh %23 : vector<2x32xf32>
    %25 = arith.mulf %20, %24 : vector<2x32xf32>
    %c0_10 = arith.constant 0 : index
    %c0_11 = arith.constant 0 : index
    %c0_12 = arith.constant 0 : index
    %26 = vector.load %arg3[%c0_10, %c0_11, %c0_12] : memref<2x8x32xf32, #tpu.memory_space<vmem>>, vector<2x1x32xf32>
    %27 = vector.shape_cast %26 : vector<2x1x32xf32> to vector<2x32xf32>
    %28 = vector.shape_cast %25 : vector<2x32xf32> to vector<2x1x32xf32>
    tpu.vector_store %arg3[%c0_10, %c0_11, %c0_12], %28 {strides = array<i32>} : memref<2x8x32xf32, #tpu.memory_space<vmem>>, vector<2x1x32xf32>,
    %c0_13 = arith.constant 0 : index
    %c1 = arith.constant 1 : index
    %c0_14 = arith.constant 0 : index
    %29 = vector.load %arg1[%c0_13, %c1, %c0_14] : memref<2x8x128xf32, #tpu.memory_space<vmem>>, vector<2x1x128xf32>
    %30 = vector.shape_cast %29 : vector<2x1x128xf32> to vector<2x128xf32>
    %cst_15 = arith.constant dense<0.000000e+00> : vector<2x128xf32>
    %31 = tpu.matmul %25, %3, %cst_15 {dimension_numbers = #tpu.dot_dimension_numbers<[1], [0], [0], [1], [0, 0, 1, 1], [], []>} : vector<2x32xf32>, vector<32x128xf32>, vector<2x128xf32> -> vector<2x128xf32>
    %32 = arith.addf %30, %31 : vector<2x128xf32>
    %33 = vector.extract_strided_slice %32 {offsets = [0, 0], sizes = [2, 96], strides = [1, 1]} : vector<2x128xf32> to vector<2x96xf32>
    %34 = arith.negf %33 : vector<2x96xf32>
    %35 = math.exp %34 : vector<2x96xf32>
    %cst_16 = arith.constant 1.000000e+00 : f32
    %36 = vector.broadcast %cst_16 : f32 to vector<2x96xf32>
    %37 = arith.addf %36, %35 : vector<2x96xf32>
    %38 = arith.divf %36, %37 : vector<2x96xf32>
    %39 = vector.extract_strided_slice %32 {offsets = [0, 96], sizes = [2, 32], strides = [1, 1]} : vector<2x128xf32> to vector<2x32xf32>
    %40 = math.tanh %39 : vector<2x32xf32>
    %41 = vector.extract_strided_slice %38 {offsets = [0, 0], sizes = [2, 32], strides = [1, 1]} : vector<2x96xf32> to vector<2x32xf32>
    %42 = vector.extract_strided_slice %38 {offsets = [0, 32], sizes = [2, 32], strides = [1, 1]} : vector<2x96xf32> to vector<2x32xf32>
    %43 = vector.extract_strided_slice %38 {offsets = [0, 64], sizes = [2, 32], strides = [1, 1]} : vector<2x96xf32> to vector<2x32xf32>
    %44 = arith.mulf %42, %23 : vector<2x32xf32>
    %45 = arith.mulf %41, %40 : vector<2x32xf32>
    %46 = arith.addf %44, %45 : vector<2x32xf32>
    %47 = math.tanh %46 : vector<2x32xf32>
    %48 = arith.mulf %43, %47 : vector<2x32xf32>
    %c0_17 = arith.constant 0 : index
    %c1_18 = arith.constant 1 : index
    %c0_19 = arith.constant 0 : index
    %49 = vector.load %arg3[%c0_17, %c1_18, %c0_19] : memref<2x8x32xf32, #tpu.memory_space<vmem>>, vector<2x1x32xf32>
    %50 = vector.shape_cast %49 : vector<2x1x32xf32> to vector<2x32xf32>
    %51 = vector.shape_cast %48 : vector<2x32xf32> to vector<2x1x32xf32>
    tpu.vector_store %arg3[%c0_17, %c1_18, %c0_19], %51 {strides = array<i32>} : memref<2x8x32xf32, #tpu.memory_space<vmem>>, vector<2x1x32xf32>,
    %c0_20 = arith.constant 0 : index
    %c2 = arith.constant 2 : index
    %c0_21 = arith.constant 0 : index
    %52 = vector.load %arg1[%c0_20, %c2, %c0_21] : memref<2x8x128xf32, #tpu.memory_space<vmem>>, vector<2x1x128xf32>
    %53 = vector.shape_cast %52 : vector<2x1x128xf32> to vector<2x128xf32>
    %cst_22 = arith.constant dense<0.000000e+00> : vector<2x128xf32>
    %54 = tpu.matmul %48, %3, %cst_22 {dimension_numbers = #tpu.dot_dimension_numbers<[1], [0], [0], [1], [0, 0, 1, 1], [], []>} : vector<2x32xf32>, vector<32x128xf32>, vector<2x128xf32> -> vector<2x128xf32>
    %55 = arith.addf %53, %54 : vector<2x128xf32>
    %56 = vector.extract_strided_slice %55 {offsets = [0, 0], sizes = [2, 96], strides = [1, 1]} : vector<2x128xf32> to vector<2x96xf32>
    %57 = arith.negf %56 : vector<2x96xf32>
    %58 = math.exp %57 : vector<2x96xf32>
    %cst_23 = arith.constant 1.000000e+00 : f32
    %59 = vector.broadcast %cst_23 : f32 to vector<2x96xf32>
    %60 = arith.addf %59, %58 : vector<2x96xf32>
    %61 = arith.divf %59, %60 : vector<2x96xf32>
    %62 = vector.extract_strided_slice %55 {offsets = [0, 96], sizes = [2, 32], strides = [1, 1]} : vector<2x128xf32> to vector<2x32xf32>
    %63 = math.tanh %62 : vector<2x32xf32>
    %64 = vector.extract_strided_slice %61 {offsets = [0, 0], sizes = [2, 32], strides = [1, 1]} : vector<2x96xf32> to vector<2x32xf32>
    %65 = vector.extract_strided_slice %61 {offsets = [0, 32], sizes = [2, 32], strides = [1, 1]} : vector<2x96xf32> to vector<2x32xf32>
    %66 = vector.extract_strided_slice %61 {offsets = [0, 64], sizes = [2, 32], strides = [1, 1]} : vector<2x96xf32> to vector<2x32xf32>
    %67 = arith.mulf %65, %46 : vector<2x32xf32>
    %68 = arith.mulf %64, %63 : vector<2x32xf32>
    %69 = arith.addf %67, %68 : vector<2x32xf32>
    %70 = math.tanh %69 : vector<2x32xf32>
    %71 = arith.mulf %66, %70 : vector<2x32xf32>
    %c0_24 = arith.constant 0 : index
    %c2_25 = arith.constant 2 : index
    %c0_26 = arith.constant 0 : index
    %72 = vector.load %arg3[%c0_24, %c2_25, %c0_26] : memref<2x8x32xf32, #tpu.memory_space<vmem>>, vector<2x1x32xf32>
    %73 = vector.shape_cast %72 : vector<2x1x32xf32> to vector<2x32xf32>
    %74 = vector.shape_cast %71 : vector<2x32xf32> to vector<2x1x32xf32>
    tpu.vector_store %arg3[%c0_24, %c2_25, %c0_26], %74 {strides = array<i32>} : memref<2x8x32xf32, #tpu.memory_space<vmem>>, vector<2x1x32xf32>,
    %c0_27 = arith.constant 0 : index
    %c3 = arith.constant 3 : index
    %c0_28 = arith.constant 0 : index
    %75 = vector.load %arg1[%c0_27, %c3, %c0_28] : memref<2x8x128xf32, #tpu.memory_space<vmem>>, vector<2x1x128xf32>
    %76 = vector.shape_cast %75 : vector<2x1x128xf32> to vector<2x128xf32>
    %cst_29 = arith.constant dense<0.000000e+00> : vector<2x128xf32>
    %77 = tpu.matmul %71, %3, %cst_29 {dimension_numbers = #tpu.dot_dimension_numbers<[1], [0], [0], [1], [0, 0, 1, 1], [], []>} : vector<2x32xf32>, vector<32x128xf32>, vector<2x128xf32> -> vector<2x128xf32>
    %78 = arith.addf %76, %77 : vector<2x128xf32>
    %79 = vector.extract_strided_slice %78 {offsets = [0, 0], sizes = [2, 96], strides = [1, 1]} : vector<2x128xf32> to vector<2x96xf32>
    %80 = arith.negf %79 : vector<2x96xf32>
    %81 = math.exp %80 : vector<2x96xf32>
    %cst_30 = arith.constant 1.000000e+00 : f32
    %82 = vector.broadcast %cst_30 : f32 to vector<2x96xf32>
    %83 = arith.addf %82, %81 : vector<2x96xf32>
    %84 = arith.divf %82, %83 : vector<2x96xf32>
    %85 = vector.extract_strided_slice %78 {offsets = [0, 96], sizes = [2, 32], strides = [1, 1]} : vector<2x128xf32> to vector<2x32xf32>
    %86 = math.tanh %85 : vector<2x32xf32>
    %87 = vector.extract_strided_slice %84 {offsets = [0, 0], sizes = [2, 32], strides = [1, 1]} : vector<2x96xf32> to vector<2x32xf32>
    %88 = vector.extract_strided_slice %84 {offsets = [0, 32], sizes = [2, 32], strides = [1, 1]} : vector<2x96xf32> to vector<2x32xf32>
    %89 = vector.extract_strided_slice %84 {offsets = [0, 64], sizes = [2, 32], strides = [1, 1]} : vector<2x96xf32> to vector<2x32xf32>
    %90 = arith.mulf %88, %69 : vector<2x32xf32>
    %91 = arith.mulf %87, %86 : vector<2x32xf32>
    %92 = arith.addf %90, %91 : vector<2x32xf32>
    %93 = math.tanh %92 : vector<2x32xf32>
    %94 = arith.mulf %89, %93 : vector<2x32xf32>
    %c0_31 = arith.constant 0 : index
    %c3_32 = arith.constant 3 : index
    %c0_33 = arith.constant 0 : index
    %95 = vector.load %arg3[%c0_31, %c3_32, %c0_33] : memref<2x8x32xf32, #tpu.memory_space<vmem>>, vector<2x1x32xf32>
    %96 = vector.shape_cast %95 : vector<2x1x32xf32> to vector<2x32xf32>
    %97 = vector.shape_cast %94 : vector<2x32xf32> to vector<2x1x32xf32>
    tpu.vector_store %arg3[%c0_31, %c3_32, %c0_33], %97 {strides = array<i32>} : memref<2x8x32xf32, #tpu.memory_space<vmem>>, vector<2x1x32xf32>,
    %c0_34 = arith.constant 0 : index
    %c4 = arith.constant 4 : index
    %c0_35 = arith.constant 0 : index
    %98 = vector.load %arg1[%c0_34, %c4, %c0_35] : memref<2x8x128xf32, #tpu.memory_space<vmem>>, vector<2x1x128xf32>
    %99 = vector.shape_cast %98 : vector<2x1x128xf32> to vector<2x128xf32>
    %cst_36 = arith.constant dense<0.000000e+00> : vector<2x128xf32>
    %100 = tpu.matmul %94, %3, %cst_36 {dimension_numbers = #tpu.dot_dimension_numbers<[1], [0], [0], [1], [0, 0, 1, 1], [], []>} : vector<2x32xf32>, vector<32x128xf32>, vector<2x128xf32> -> vector<2x128xf32>
    %101 = arith.addf %99, %100 : vector<2x128xf32>
    %102 = vector.extract_strided_slice %101 {offsets = [0, 0], sizes = [2, 96], strides = [1, 1]} : vector<2x128xf32> to vector<2x96xf32>
    %103 = arith.negf %102 : vector<2x96xf32>
    %104 = math.exp %103 : vector<2x96xf32>
    %cst_37 = arith.constant 1.000000e+00 : f32
    %105 = vector.broadcast %cst_37 : f32 to vector<2x96xf32>
    %106 = arith.addf %105, %104 : vector<2x96xf32>
    %107 = arith.divf %105, %106 : vector<2x96xf32>
    %108 = vector.extract_strided_slice %101 {offsets = [0, 96], sizes = [2, 32], strides = [1, 1]} : vector<2x128xf32> to vector<2x32xf32>
    %109 = math.tanh %108 : vector<2x32xf32>
    %110 = vector.extract_strided_slice %107 {offsets = [0, 0], sizes = [2, 32], strides = [1, 1]} : vector<2x96xf32> to vector<2x32xf32>
    %111 = vector.extract_strided_slice %107 {offsets = [0, 32], sizes = [2, 32], strides = [1, 1]} : vector<2x96xf32> to vector<2x32xf32>
    %112 = vector.extract_strided_slice %107 {offsets = [0, 64], sizes = [2, 32], strides = [1, 1]} : vector<2x96xf32> to vector<2x32xf32>
    %113 = arith.mulf %111, %92 : vector<2x32xf32>
    %114 = arith.mulf %110, %109 : vector<2x32xf32>
    %115 = arith.addf %113, %114 : vector<2x32xf32>
    %116 = math.tanh %115 : vector<2x32xf32>
    %117 = arith.mulf %112, %116 : vector<2x32xf32>
    %c0_38 = arith.constant 0 : index
    %c4_39 = arith.constant 4 : index
    %c0_40 = arith.constant 0 : index
    %118 = vector.load %arg3[%c0_38, %c4_39, %c0_40] : memref<2x8x32xf32, #tpu.memory_space<vmem>>, vector<2x1x32xf32>
    %119 = vector.shape_cast %118 : vector<2x1x32xf32> to vector<2x32xf32>
    %120 = vector.shape_cast %117 : vector<2x32xf32> to vector<2x1x32xf32>
    tpu.vector_store %arg3[%c0_38, %c4_39, %c0_40], %120 {strides = array<i32>} : memref<2x8x32xf32, #tpu.memory_space<vmem>>, vector<2x1x32xf32>,
    %c0_41 = arith.constant 0 : index
    %c5 = arith.constant 5 : index
    %c0_42 = arith.constant 0 : index
    %121 = vector.load %arg1[%c0_41, %c5, %c0_42] : memref<2x8x128xf32, #tpu.memory_space<vmem>>, vector<2x1x128xf32>
    %122 = vector.shape_cast %121 : vector<2x1x128xf32> to vector<2x128xf32>
    %cst_43 = arith.constant dense<0.000000e+00> : vector<2x128xf32>
    %123 = tpu.matmul %117, %3, %cst_43 {dimension_numbers = #tpu.dot_dimension_numbers<[1], [0], [0], [1], [0, 0, 1, 1], [], []>} : vector<2x32xf32>, vector<32x128xf32>, vector<2x128xf32> -> vector<2x128xf32>
    %124 = arith.addf %122, %123 : vector<2x128xf32>
    %125 = vector.extract_strided_slice %124 {offsets = [0, 0], sizes = [2, 96], strides = [1, 1]} : vector<2x128xf32> to vector<2x96xf32>
    %126 = arith.negf %125 : vector<2x96xf32>
    %127 = math.exp %126 : vector<2x96xf32>
    %cst_44 = arith.constant 1.000000e+00 : f32
    %128 = vector.broadcast %cst_44 : f32 to vector<2x96xf32>
    %129 = arith.addf %128, %127 : vector<2x96xf32>
    %130 = arith.divf %128, %129 : vector<2x96xf32>
    %131 = vector.extract_strided_slice %124 {offsets = [0, 96], sizes = [2, 32], strides = [1, 1]} : vector<2x128xf32> to vector<2x32xf32>
    %132 = math.tanh %131 : vector<2x32xf32>
    %133 = vector.extract_strided_slice %130 {offsets = [0, 0], sizes = [2, 32], strides = [1, 1]} : vector<2x96xf32> to vector<2x32xf32>
    %134 = vector.extract_strided_slice %130 {offsets = [0, 32], sizes = [2, 32], strides = [1, 1]} : vector<2x96xf32> to vector<2x32xf32>
    %135 = vector.extract_strided_slice %130 {offsets = [0, 64], sizes = [2, 32], strides = [1, 1]} : vector<2x96xf32> to vector<2x32xf32>
    %136 = arith.mulf %134, %115 : vector<2x32xf32>
    %137 = arith.mulf %133, %132 : vector<2x32xf32>
    %138 = arith.addf %136, %137 : vector<2x32xf32>
    %139 = math.tanh %138 : vector<2x32xf32>
    %140 = arith.mulf %135, %139 : vector<2x32xf32>
    %c0_45 = arith.constant 0 : index
    %c5_46 = arith.constant 5 : index
    %c0_47 = arith.constant 0 : index
    %141 = vector.load %arg3[%c0_45, %c5_46, %c0_47] : memref<2x8x32xf32, #tpu.memory_space<vmem>>, vector<2x1x32xf32>
    %142 = vector.shape_cast %141 : vector<2x1x32xf32> to vector<2x32xf32>
    %143 = vector.shape_cast %140 : vector<2x32xf32> to vector<2x1x32xf32>
    tpu.vector_store %arg3[%c0_45, %c5_46, %c0_47], %143 {strides = array<i32>} : memref<2x8x32xf32, #tpu.memory_space<vmem>>, vector<2x1x32xf32>,
    %c0_48 = arith.constant 0 : index
    %c6 = arith.constant 6 : index
    %c0_49 = arith.constant 0 : index
    %144 = vector.load %arg1[%c0_48, %c6, %c0_49] : memref<2x8x128xf32, #tpu.memory_space<vmem>>, vector<2x1x128xf32>
    %145 = vector.shape_cast %144 : vector<2x1x128xf32> to vector<2x128xf32>
    %cst_50 = arith.constant dense<0.000000e+00> : vector<2x128xf32>
    %146 = tpu.matmul %140, %3, %cst_50 {dimension_numbers = #tpu.dot_dimension_numbers<[1], [0], [0], [1], [0, 0, 1, 1], [], []>} : vector<2x32xf32>, vector<32x128xf32>, vector<2x128xf32> -> vector<2x128xf32>
    %147 = arith.addf %145, %146 : vector<2x128xf32>
    %148 = vector.extract_strided_slice %147 {offsets = [0, 0], sizes = [2, 96], strides = [1, 1]} : vector<2x128xf32> to vector<2x96xf32>
    %149 = arith.negf %148 : vector<2x96xf32>
    %150 = math.exp %149 : vector<2x96xf32>
    %cst_51 = arith.constant 1.000000e+00 : f32
    %151 = vector.broadcast %cst_51 : f32 to vector<2x96xf32>
    %152 = arith.addf %151, %150 : vector<2x96xf32>
    %153 = arith.divf %151, %152 : vector<2x96xf32>
    %154 = vector.extract_strided_slice %147 {offsets = [0, 96], sizes = [2, 32], strides = [1, 1]} : vector<2x128xf32> to vector<2x32xf32>
    %155 = math.tanh %154 : vector<2x32xf32>
    %156 = vector.extract_strided_slice %153 {offsets = [0, 0], sizes = [2, 32], strides = [1, 1]} : vector<2x96xf32> to vector<2x32xf32>
    %157 = vector.extract_strided_slice %153 {offsets = [0, 32], sizes = [2, 32], strides = [1, 1]} : vector<2x96xf32> to vector<2x32xf32>
    %158 = vector.extract_strided_slice %153 {offsets = [0, 64], sizes = [2, 32], strides = [1, 1]} : vector<2x96xf32> to vector<2x32xf32>
    %159 = arith.mulf %157, %138 : vector<2x32xf32>
    %160 = arith.mulf %156, %155 : vector<2x32xf32>
    %161 = arith.addf %159, %160 : vector<2x32xf32>
    %162 = math.tanh %161 : vector<2x32xf32>
    %163 = arith.mulf %158, %162 : vector<2x32xf32>
    %c0_52 = arith.constant 0 : index
    %c6_53 = arith.constant 6 : index
    %c0_54 = arith.constant 0 : index
    %164 = vector.load %arg3[%c0_52, %c6_53, %c0_54] : memref<2x8x32xf32, #tpu.memory_space<vmem>>, vector<2x1x32xf32>
    %165 = vector.shape_cast %164 : vector<2x1x32xf32> to vector<2x32xf32>
    %166 = vector.shape_cast %163 : vector<2x32xf32> to vector<2x1x32xf32>
    tpu.vector_store %arg3[%c0_52, %c6_53, %c0_54], %166 {strides = array<i32>} : memref<2x8x32xf32, #tpu.memory_space<vmem>>, vector<2x1x32xf32>,
    %c0_55 = arith.constant 0 : index
    %c7 = arith.constant 7 : index
    %c0_56 = arith.constant 0 : index
    %167 = vector.load %arg1[%c0_55, %c7, %c0_56] : memref<2x8x128xf32, #tpu.memory_space<vmem>>, vector<2x1x128xf32>
    %168 = vector.shape_cast %167 : vector<2x1x128xf32> to vector<2x128xf32>
    %cst_57 = arith.constant dense<0.000000e+00> : vector<2x128xf32>
    %169 = tpu.matmul %163, %3, %cst_57 {dimension_numbers = #tpu.dot_dimension_numbers<[1], [0], [0], [1], [0, 0, 1, 1], [], []>} : vector<2x32xf32>, vector<32x128xf32>, vector<2x128xf32> -> vector<2x128xf32>
    %170 = arith.addf %168, %169 : vector<2x128xf32>
    %171 = vector.extract_strided_slice %170 {offsets = [0, 0], sizes = [2, 96], strides = [1, 1]} : vector<2x128xf32> to vector<2x96xf32>
    %172 = arith.negf %171 : vector<2x96xf32>
    %173 = math.exp %172 : vector<2x96xf32>
    %cst_58 = arith.constant 1.000000e+00 : f32
    %174 = vector.broadcast %cst_58 : f32 to vector<2x96xf32>
    %175 = arith.addf %174, %173 : vector<2x96xf32>
    %176 = arith.divf %174, %175 : vector<2x96xf32>
    %177 = vector.extract_strided_slice %170 {offsets = [0, 96], sizes = [2, 32], strides = [1, 1]} : vector<2x128xf32> to vector<2x32xf32>
    %178 = math.tanh %177 : vector<2x32xf32>
    %179 = vector.extract_strided_slice %176 {offsets = [0, 0], sizes = [2, 32], strides = [1, 1]} : vector<2x96xf32> to vector<2x32xf32>
    %180 = vector.extract_strided_slice %176 {offsets = [0, 32], sizes = [2, 32], strides = [1, 1]} : vector<2x96xf32> to vector<2x32xf32>
    %181 = vector.extract_strided_slice %176 {offsets = [0, 64], sizes = [2, 32], strides = [1, 1]} : vector<2x96xf32> to vector<2x32xf32>
    %182 = arith.mulf %180, %161 : vector<2x32xf32>
    %183 = arith.mulf %179, %178 : vector<2x32xf32>
    %184 = arith.addf %182, %183 : vector<2x32xf32>
    %185 = math.tanh %184 : vector<2x32xf32>
    %186 = arith.mulf %181, %185 : vector<2x32xf32>
    %c0_59 = arith.constant 0 : index
    %c7_60 = arith.constant 7 : index
    %c0_61 = arith.constant 0 : index
    %187 = vector.load %arg3[%c0_59, %c7_60, %c0_61] : memref<2x8x32xf32, #tpu.memory_space<vmem>>, vector<2x1x32xf32>
    %188 = vector.shape_cast %187 : vector<2x1x32xf32> to vector<2x32xf32>
    %189 = vector.shape_cast %186 : vector<2x32xf32> to vector<2x1x32xf32>
    tpu.vector_store %arg3[%c0_59, %c7_60, %c0_61], %189 {strides = array<i32>} : memref<2x8x32xf32, #tpu.memory_space<vmem>>, vector<2x1x32xf32>,
    %c0_62 = arith.constant 0 : index
    %c0_63 = arith.constant 0 : index
    %190 = vector.load %arg4[%c0_62, %c0_63] : memref<2x32xf32, #tpu.memory_space<vmem>>, vector<2x32xf32>
    tpu.vector_store %arg4[%c0_62, %c0_63], %186 {strides = array<i32>} : memref<2x32xf32, #tpu.memory_space<vmem>>, vector<2x32xf32>,
    %c0_64 = arith.constant 0 : index
    %c0_65 = arith.constant 0 : index
    %191 = vector.load %arg5[%c0_64, %c0_65] : memref<2x32xf32, #tpu.memory_space<vmem>>, vector<2x32xf32>
    tpu.vector_store %arg5[%c0_64, %c0_65], %184 {strides = array<i32>} : memref<2x32xf32, #tpu.memory_space<vmem>>, vector<2x32xf32>,
    return
  }
  func.func @transform_0(%arg0: i32) -> (i32, i32, i32) {
    %c0_i32 = arith.constant 0 : i32
    %c0_i32_0 = arith.constant 0 : i32
    %c0_i32_1 = arith.constant 0 : i32
    return %c0_i32, %arg0, %c0_i32_0 : i32, i32, i32
  }
  func.func @transform_1(%arg0: i32) -> (i32, i32) {
    %c0_i32 = arith.constant 0 : i32
    %c0_i32_0 = arith.constant 0 : i32
    %c0_i32_1 = arith.constant 0 : i32
    return %c0_i32, %c0_i32_0 : i32, i32
  }
  func.func @transform_2(%arg0: i32) -> (i32, i32, i32) {
    %c0_i32 = arith.constant 0 : i32
    %c0_i32_0 = arith.constant 0 : i32
    %c0_i32_1 = arith.constant 0 : i32
    return %c0_i32, %arg0, %c0_i32_0 : i32, i32, i32
  }
}

</mosaic_0001>

<llo_original>
// kernel: lstm_forward.1
$region0: #{lstm_forward.1}
  #allocation0 [shape = 'u32[]', space=smem, size = 0x4, offset = 0x4, fixed_abs, tag = 'smem constant byte address 0x4 - core index']
  #allocation1 [shape = 'u32[72,128]{1,0:T(1,128)}', space=vmem, size = 0x9000, scoped, tag = 'internal scratch']
  #allocation2 [shape = 'f32[2,32]{1,0:T(2,128)}', space=vmem, size = 0x400, scoped, tag = 'scratch operand']
  #allocation3 [shape = 'f32[2,32]{1,0:T(2,128)}', space=vmem, size = 0x400, scoped, tag = 'scratch operand']
  %s0 = inlined_call_operand.vmem [shape: f32[2,8,128], index: 0, kind: input, shape index: {}]
  %s1 = inlined_call_operand.vmem [shape: f32[32,128], index: 1, kind: input, shape index: {}]
  %s2 = inlined_call_operand.hbm [shape: f32[2,8,32], index: 2, kind: output, shape index: {}]
  %s3 = sld [smem:[#allocation0]]
  $region22: #{lstm_forward.1} parent=0
    _
  %s5 = ssub.s32 1, %s3
  %s6 = scalar_select 0, %s5, %s3
  $region1: #{lstm_forward.1} parent=0
    #allocation4 [shape = 'u8[8192]{0}', space=vmem, size = 0x2000, scoped, tag = 'output window, operand 0, single buffered']
    #allocation5 [shape = 's32[1]{0}', space=sflag, size = 0x4, scoped, tag = 'scoped memory for lstm_forward.1']
    %7 = vsyncpa [#allocation5], 0
    // Predicated region
    $region2: #{lstm_forward.1} parent=1 // pred_check
      _
    $region3: #{lstm_forward.1} parent=1 // pred_check_branch
      %9 = sbr.rel (0) target = $region5
    $region4: #{lstm_forward.1} parent=1 // pred_region
      _
    $region5: #{lstm_forward.1} parent=1 // pred_fallthru
      _
    // Predicated region
    $region6: #{lstm_forward.1} parent=1 // pred_check
      _
    $region7: #{lstm_forward.1} parent=1 // pred_check_branch
      %11 = sbr.rel (0) target = $region9
    $region8: #{lstm_forward.1} parent=1 // pred_region
      _
    $region9: #{lstm_forward.1} parent=1 // pred_fallthru
      _
    %p12 = scmp.eq.s32.totalorder 0, 0
    // Predicated region
    $region10: #{lstm_forward.1} parent=1 // pred_check
      %p13 = pneg %p12
    $region11: #{lstm_forward.1} parent=1 // pred_check_branch
      %15 = sbr.rel (%p13) target = $region13
    $region12: #{lstm_forward.1} parent=1 // pred_region
      %vm16 = vcmask 254976
      %17 = vst.msk [vmem:[#allocation2] sm:$0x3] %vm16, 0.0
      %18 = vst.msk [vmem:[#allocation3] sm:$0x3] %vm16, 0.0
    $region13: #{lstm_forward.1} parent=1 // pred_fallthru
      _
    %v19 = vld [vmem:[%s1] sm:$0xff]
    %v20 = vld [vmem:[%s1 + $0x8] sm:$0xff]
    %v21 = vld [vmem:[%s1 + $0x10] sm:$0xff]
    %v22 = vld [vmem:[%s1 + $0x18] sm:$0xff]
    %v23 = vld [vmem:[#allocation2] sm:$0x3]
    %v24 = vld [vmem:[#allocation3] sm:$0x3]
    %v25 = vld [vmem:[%s0] sm:$0x1]
    %v26 = vld [vmem:[%s0 + $0x8] sm:$0x1]
    %vm27 = vcmask 261120
    %v29 = vsel %vm27, %v23, 0
    %31 = vmatpush.msra.mxu0 0.0
    %32 = vmatpush.msra.mxu0 0.0
    %33 = vmatpush.msra.mxu0 0.0
    %34 = vmatpush.msra.mxu0 0.0
    %35 = vmatpush.msra.mxu0 0.0
    %36 = vmatpush.msra.mxu0 0.0
    %37 = vmatpush.msra.mxu0 0.0
    %38 = vmatpush.msra.mxu0 0.0
    %39 = vmatpush.msra.mxu0 0.0
    %40 = vmatpush.msra.mxu0 0.0
    %41 = vmatpush.msra.mxu0 0.0
    %42 = vmatpush.msra.mxu0 0.0
    %43 = vmatpush.msra.mxu0 %v22
    %44 = vmatpush.msra.mxu0 %v21
    %45 = vmatpush.msra.mxu0 %v20
    %46 = vmatpush.msra.mxu0 %v19
    %47 = vmatmul.f32.gmra.mxu0 %v29
    %v48 = vpop.f32.mrf.mxu0
    %v49 = vadd.f32 0.0, %v48
    %50 = vdwg.mxu0
    %v52 = vrot.slane %v49, 1
    %v55 = vadd.f32 %v25, %v49
    %v56 = vadd.f32 %v26, %v52
    %v57 = vxor.u32 %v55, 2147483648
    %v58 = vxor.u32 %v56, 2147483648
    %v59 = vmul.f32 %v57, 1.442695
    %v60 = vpow.pop %v59
    %v61 = vmul.f32 %v58, 1.442695
    %v62 = vpow.pop %v61
    %v63 = vadd.f32 %v60, 1.0
    %v64 = vadd.f32 %v62, 1.0
    %v65 = vrcp.pop %v63
    %v66 = vmul.f32 %v63, %v65
    %v67 = vsub.f32 1.0, %v66
    %v68 = vmul.f32 %v65, %v67
    %v69 = vadd.f32 %v65, %v68
    %vm70 = vweird.f32 %v63
    %vm71 = vweird.f32 %v65
    %vm72 = vmor %vm70, %vm71
    %v73 = vsel %vm72, %v65, %v69
    %v74 = vand.u32 2147483647, %v63
    %vm75 = vcmp.eq.f32.partialorder %v74, 8.507059e+37
    %v76 = vand.u32 %v63, 2147483648
    %v77 = vor.u32 1.1754944e-38, %v76
    %v78 = vsel %vm75, %v77, %v73
    %v79 = vmul.f32 1.0, %v78
    %v80 = vrcp.pop %v64
    %v81 = vmul.f32 %v64, %v80
    %v82 = vsub.f32 1.0, %v81
    %v83 = vmul.f32 %v80, %v82
    %v84 = vadd.f32 %v80, %v83
    %vm85 = vweird.f32 %v64
    %vm86 = vweird.f32 %v80
    %vm87 = vmor %vm85, %vm86
    %v88 = vsel %vm87, %v80, %v84
    %v89 = vand.u32 2147483647, %v64
    %vm90 = vcmp.eq.f32.partialorder %v89, 8.507059e+37
    %v91 = vand.u32 %v64, 2147483648
    %v92 = vor.u32 1.1754944e-38, %v91
    %v93 = vsel %vm90, %v92, %v88
    %v94 = vmul.f32 1.0, %v93
    %v95 = vtanh.pop %v55
    %v96 = vtanh.pop %v56
    %v98 = vrot.slane %v24, 1
    %99 = vrot.lane.b32.xlu0 %v24, 32
    %v100 = vpop.permute.xlu0 %99
    %101 = vrot.lane.b32.xlu0 %v98, 32
    %v102 = vpop.permute.xlu0 %101
    %v105 = vmul.f32 %v79, %v100
    %v106 = vmul.f32 %v94, %v102
    %109 = vrot.lane.b32.xlu0 %v95, 32
    %v110 = vpop.permute.xlu0 %109
    %111 = vrot.lane.b32.xlu0 %v96, 32
    %v112 = vpop.permute.xlu0 %111
    %v115 = vmul.f32 %v79, %v110
    %v116 = vmul.f32 %v94, %v112
    %119 = vrot.lane.b32.xlu0 %v115, 32
    %v120 = vpop.permute.xlu0 %119
    %121 = vrot.lane.b32.xlu0 %v116, 32
    %v122 = vpop.permute.xlu0 %121
    %v125 = vadd.f32 %v105, %v120
    %v126 = vadd.f32 %v106, %v122
    %v127 = vtanh.pop %v125
    %v128 = vtanh.pop %v126
    %131 = vrot.lane.b32.xlu0 %v127, 32
    %v132 = vpop.permute.xlu0 %131
    %133 = vrot.lane.b32.xlu0 %v128, 32
    %v134 = vpop.permute.xlu0 %133
    %v137 = vmul.f32 %v79, %v132
    %v138 = vmul.f32 %v94, %v134
    %141 = vrot.lane.b32.xlu0 %v137, 64
    %v142 = vpop.permute.xlu0 %141
    %143 = vrot.lane.b32.xlu0 %v138, 64
    %v144 = vpop.permute.xlu0 %143
    %vm147 = vcmask 253952
    %148 = vst.msk [vmem:[#allocation4] sm:$0x1] %vm147, %v142
    %149 = vst.msk [vmem:[#allocation4 + $0x8] sm:$0x1] %vm147, %v144
    %v150 = vld [vmem:[%s0 + $0x1] sm:$0x1]
    %v151 = vld [vmem:[%s0 + $0x9] sm:$0x1]
    %v152 = vrot.slane %v138, 7
    %vm153 = vcmask 1041409
    %v154 = vsel %vm153, %v152, %v137
    %155 = vrot.lane.b32.xlu0 %v154, 64
    %v156 = vpop.permute.xlu0 %155
    %v157 = vsel %vm27, %v156, 0
    %159 = vmatpush.msra.mxu0 0.0
    %160 = vmatpush.msra.mxu0 0.0
    %161 = vmatpush.msra.mxu0 0.0
    %162 = vmatpush.msra.mxu0 0.0
    %163 = vmatpush.msra.mxu0 0.0
    %164 = vmatpush.msra.mxu0 0.0
    %165 = vmatpush.msra.mxu0 0.0
    %166 = vmatpush.msra.mxu0 0.0
    %167 = vmatpush.msra.mxu0 0.0
    %168 = vmatpush.msra.mxu0 0.0
    %169 = vmatpush.msra.mxu0 0.0
    %170 = vmatpush.msra.mxu0 0.0
    %171 = vmatpush.msra.mxu0 %v22
    %172 = vmatpush.msra.mxu0 %v21
    %173 = vmatpush.msra.mxu0 %v20
    %174 = vmatpush.msra.mxu0 %v19
    %175 = vmatmul.f32.gmra.mxu0 %v157
    %v176 = vpop.f32.mrf.mxu0
    %v177 = vadd.f32 0.0, %v176
    %178 = vdwg.mxu0
    %v180 = vrot.slane %v177, 1
    %v183 = vadd.f32 %v150, %v177
    %v184 = vadd.f32 %v151, %v180
    %v185 = vxor.u32 %v183, 2147483648
    %v186 = vxor.u32 %v184, 2147483648
    %v187 = vmul.f32 %v185, 1.442695
    %v188 = vpow.pop %v187
    %v189 = vmul.f32 %v186, 1.442695
    %v190 = vpow.pop %v189
    %v191 = vadd.f32 %v188, 1.0
    %v192 = vadd.f32 %v190, 1.0
    %v193 = vrcp.pop %v191
    %v194 = vmul.f32 %v191, %v193
    %v195 = vsub.f32 1.0, %v194
    %v196 = vmul.f32 %v193, %v195
    %v197 = vadd.f32 %v193, %v196
    %vm198 = vweird.f32 %v191
    %vm199 = vweird.f32 %v193
    %vm200 = vmor %vm198, %vm199
    %v201 = vsel %vm200, %v193, %v197
    %v202 = vand.u32 2147483647, %v191
    %vm203 = vcmp.eq.f32.partialorder %v202, 8.507059e+37
    %v204 = vand.u32 %v191, 2147483648
    %v205 = vor.u32 1.1754944e-38, %v204
    %v206 = vsel %vm203, %v205, %v201
    %v207 = vmul.f32 1.0, %v206
    %v208 = vrcp.pop %v192
    %v209 = vmul.f32 %v192, %v208
    %v210 = vsub.f32 1.0, %v209
    %v211 = vmul.f32 %v208, %v210
    %v212 = vadd.f32 %v208, %v211
    %vm213 = vweird.f32 %v192
    %vm214 = vweird.f32 %v208
    %vm215 = vmor %vm213, %vm214
    %v216 = vsel %vm215, %v208, %v212
    %v217 = vand.u32 2147483647, %v192
    %vm218 = vcmp.eq.f32.partialorder %v217, 8.507059e+37
    %v219 = vand.u32 %v192, 2147483648
    %v220 = vor.u32 1.1754944e-38, %v219
    %v221 = vsel %vm218, %v220, %v216
    %v222 = vmul.f32 1.0, %v221
    %v223 = vtanh.pop %v183
    %v224 = vtanh.pop %v184
    %v225 = vmul.f32 %v207, %v125
    %v226 = vmul.f32 %v222, %v126
    %229 = vrot.lane.b32.xlu0 %v223, 32
    %v230 = vpop.permute.xlu0 %229
    %231 = vrot.lane.b32.xlu0 %v224, 32
    %v232 = vpop.permute.xlu0 %231
    %v235 = vmul.f32 %v207, %v230
    %v236 = vmul.f32 %v222, %v232
    %239 = vrot.lane.b32.xlu0 %v235, 32
    %v240 = vpop.permute.xlu0 %239
    %241 = vrot.lane.b32.xlu0 %v236, 32
    %v242 = vpop.permute.xlu0 %241
    %v245 = vadd.f32 %v225, %v240
    %v246 = vadd.f32 %v226, %v242
    %v247 = vtanh.pop %v245
    %v248 = vtanh.pop %v246
    %251 = vrot.lane.b32.xlu0 %v247, 32
    %v252 = vpop.permute.xlu0 %251
    %253 = vrot.lane.b32.xlu0 %v248, 32
    %v254 = vpop.permute.xlu0 %253
    %v257 = vmul.f32 %v207, %v252
    %v258 = vmul.f32 %v222, %v254
    %261 = vrot.lane.b32.xlu0 %v257, 64
    %v262 = vpop.permute.xlu0 %261
    %263 = vrot.lane.b32.xlu0 %v258, 64
    %v264 = vpop.permute.xlu0 %263
    %267 = vst.msk [vmem:[#allocation4 + $0x1] sm:$0x1] %vm147, %v262
    %268 = vst.msk [vmem:[#allocation4 + $0x9] sm:$0x1] %vm147, %v264
    %v269 = vld [vmem:[%s0 + $0x2] sm:$0x1]
    %v270 = vld [vmem:[%s0 + $0xa] sm:$0x1]
    %v271 = vrot.slane %v258, 7
    %v272 = vsel %vm153, %v271, %v257
    %273 = vrot.lane.b32.xlu0 %v272, 64
    %v274 = vpop.permute.xlu0 %273
    %v275 = vsel %vm27, %v274, 0
    %277 = vmatpush.msra.mxu0 0.0
    %278 = vmatpush.msra.mxu0 0.0
    %279 = vmatpush.msra.mxu0 0.0
    %280 = vmatpush.msra.mxu0 0.0
    %281 = vmatpush.msra.mxu0 0.0
    %282 = vmatpush.msra.mxu0 0.0
    %283 = vmatpush.msra.mxu0 0.0
    %284 = vmatpush.msra.mxu0 0.0
    %285 = vmatpush.msra.mxu0 0.0
    %286 = vmatpush.msra.mxu0 0.0
    %287 = vmatpush.msra.mxu0 0.0
    %288 = vmatpush.msra.mxu0 0.0
    %289 = vmatpush.msra.mxu0 %v22
    %290 = vmatpush.msra.mxu0 %v21
    %291 = vmatpush.msra.mxu0 %v20
    %292 = vmatpush.msra.mxu0 %v19
    %293 = vmatmul.f32.gmra.mxu0 %v275
    %v294 = vpop.f32.mrf.mxu0
    %v295 = vadd.f32 0.0, %v294
    %296 = vdwg.mxu0
    %v298 = vrot.slane %v295, 1
    %v301 = vadd.f32 %v269, %v295
    %v302 = vadd.f32 %v270, %v298
    %v303 = vxor.u32 %v301, 2147483648
    %v304 = vxor.u32 %v302, 2147483648
    %v305 = vmul.f32 %v303, 1.442695
    %v306 = vpow.pop %v305
    %v307 = vmul.f32 %v304, 1.442695
    %v308 = vpow.pop %v307
    %v309 = vadd.f32 %v306, 1.0
    %v310 = vadd.f32 %v308, 1.0
    %v311 = vrcp.pop %v309
    %v312 = vmul.f32 %v309, %v311
    %v313 = vsub.f32 1.0, %v312
    %v314 = vmul.f32 %v311, %v313
    %v315 = vadd.f32 %v311, %v314
    %vm316 = vweird.f32 %v309
    %vm317 = vweird.f32 %v311
    %vm318 = vmor %vm316, %vm317
    %v319 = vsel %vm318, %v311, %v315
    %v320 = vand.u32 2147483647, %v309
    %vm321 = vcmp.eq.f32.partialorder %v320, 8.507059e+37
    %v322 = vand.u32 %v309, 2147483648
    %v323 = vor.u32 1.1754944e-38, %v322
    %v324 = vsel %vm321, %v323, %v319
    %v325 = vmul.f32 1.0, %v324
    %v326 = vrcp.pop %v310
    %v327 = vmul.f32 %v310, %v326
    %v328 = vsub.f32 1.0, %v327
    %v329 = vmul.f32 %v326, %v328
    %v330 = vadd.f32 %v326, %v329
    %vm331 = vweird.f32 %v310
    %vm332 = vweird.f32 %v326
    %vm333 = vmor %vm331, %vm332
    %v334 = vsel %vm333, %v326, %v330
    %v335 = vand.u32 2147483647, %v310
    %vm336 = vcmp.eq.f32.partialorder %v335, 8.507059e+37
    %v337 = vand.u32 %v310, 2147483648
    %v338 = vor.u32 1.1754944e-38, %v337
    %v339 = vsel %vm336, %v338, %v334
    %v340 = vmul.f32 1.0, %v339
    %v341 = vtanh.pop %v301
    %v342 = vtanh.pop %v302
    %v343 = vmul.f32 %v325, %v245
    %v344 = vmul.f32 %v340, %v246
    %347 = vrot.lane.b32.xlu0 %v341, 32
    %v348 = vpop.permute.xlu0 %347
    %349 = vrot.lane.b32.xlu0 %v342, 32
    %v350 = vpop.permute.xlu0 %349
    %v353 = vmul.f32 %v325, %v348
    %v354 = vmul.f32 %v340, %v350
    %357 = vrot.lane.b32.xlu0 %v353, 32
    %v358 = vpop.permute.xlu0 %357
    %359 = vrot.lane.b32.xlu0 %v354, 32
    %v360 = vpop.permute.xlu0 %359
    %v363 = vadd.f32 %v343, %v358
    %v364 = vadd.f32 %v344, %v360
    %v365 = vtanh.pop %v363
    %v366 = vtanh.pop %v364
    %369 = vrot.lane.b32.xlu0 %v365, 32
    %v370 = vpop.permute.xlu0 %369
    %371 = vrot.lane.b32.xlu0 %v366, 32
    %v372 = vpop.permute.xlu0 %371
    %v375 = vmul.f32 %v325, %v370
    %v376 = vmul.f32 %v340, %v372
    %379 = vrot.lane.b32.xlu0 %v375, 64
    %v380 = vpop.permute.xlu0 %379
    %381 = vrot.lane.b32.xlu0 %v376, 64
    %v382 = vpop.permute.xlu0 %381
    %385 = vst.msk [vmem:[#allocation4 + $0x2] sm:$0x1] %vm147, %v380
    %386 = vst.msk [vmem:[#allocation4 + $0xa] sm:$0x1] %vm147, %v382
    %v387 = vld [vmem:[%s0 + $0x3] sm:$0x1]
    %v388 = vld [vmem:[%s0 + $0xb] sm:$0x1]
    %v389 = vrot.slane %v376, 7
    %v390 = vsel %vm153, %v389, %v375
    %391 = vrot.lane.b32.xlu0 %v390, 64
    %v392 = vpop.permute.xlu0 %391
    %v393 = vsel %vm27, %v392, 0
    %395 = vmatpush.msra.mxu0 0.0
    %396 = vmatpush.msra.mxu0 0.0
    %397 = vmatpush.msra.mxu0 0.0
    %398 = vmatpush.msra.mxu0 0.0
    %399 = vmatpush.msra.mxu0 0.0
    %400 = vmatpush.msra.mxu0 0.0
    %401 = vmatpush.msra.mxu0 0.0
    %402 = vmatpush.msra.mxu0 0.0
    %403 = vmatpush.msra.mxu0 0.0
    %404 = vmatpush.msra.mxu0 0.0
    %405 = vmatpush.msra.mxu0 0.0
    %406 = vmatpush.msra.mxu0 0.0
    %407 = vmatpush.msra.mxu0 %v22
    %408 = vmatpush.msra.mxu0 %v21
    %409 = vmatpush.msra.mxu0 %v20
    %410 = vmatpush.msra.mxu0 %v19
    %411 = vmatmul.f32.gmra.mxu0 %v393
    %v412 = vpop.f32.mrf.mxu0
    %v413 = vadd.f32 0.0, %v412
    %414 = vdwg.mxu0
    %v416 = vrot.slane %v413, 1
    %v419 = vadd.f32 %v387, %v413
    %v420 = vadd.f32 %v388, %v416
    %v421 = vxor.u32 %v419, 2147483648
    %v422 = vxor.u32 %v420, 2147483648
    %v423 = vmul.f32 %v421, 1.442695
    %v424 = vpow.pop %v423
    %v425 = vmul.f32 %v422, 1.442695
    %v426 = vpow.pop %v425
    %v427 = vadd.f32 %v424, 1.0
    %v428 = vadd.f32 %v426, 1.0
    %v429 = vrcp.pop %v427
    %v430 = vmul.f32 %v427, %v429
    %v431 = vsub.f32 1.0, %v430
    %v432 = vmul.f32 %v429, %v431
    %v433 = vadd.f32 %v429, %v432
    %vm434 = vweird.f32 %v427
    %vm435 = vweird.f32 %v429
    %vm436 = vmor %vm434, %vm435
    %v437 = vsel %vm436, %v429, %v433
    %v438 = vand.u32 2147483647, %v427
    %vm439 = vcmp.eq.f32.partialorder %v438, 8.507059e+37
    %v440 = vand.u32 %v427, 2147483648
    %v441 = vor.u32 1.1754944e-38, %v440
    %v442 = vsel %vm439, %v441, %v437
    %v443 = vmul.f32 1.0, %v442
    %v444 = vrcp.pop %v428
    %v445 = vmul.f32 %v428, %v444
    %v446 = vsub.f32 1.0, %v445
    %v447 = vmul.f32 %v444, %v446
    %v448 = vadd.f32 %v444, %v447
    %vm449 = vweird.f32 %v428
    %vm450 = vweird.f32 %v444
    %vm451 = vmor %vm449, %vm450
    %v452 = vsel %vm451, %v444, %v448
    %v453 = vand.u32 2147483647, %v428
    %vm454 = vcmp.eq.f32.partialorder %v453, 8.507059e+37
    %v455 = vand.u32 %v428, 2147483648
    %v456 = vor.u32 1.1754944e-38, %v455
    %v457 = vsel %vm454, %v456, %v452
    %v458 = vmul.f32 1.0, %v457
    %v459 = vtanh.pop %v419
    %v460 = vtanh.pop %v420
    %v461 = vmul.f32 %v443, %v363
    %v462 = vmul.f32 %v458, %v364
    %465 = vrot.lane.b32.xlu0 %v459, 32
    %v466 = vpop.permute.xlu0 %465
    %467 = vrot.lane.b32.xlu0 %v460, 32
    %v468 = vpop.permute.xlu0 %467
    %v471 = vmul.f32 %v443, %v466
    %v472 = vmul.f32 %v458, %v468
    %475 = vrot.lane.b32.xlu0 %v471, 32
    %v476 = vpop.permute.xlu0 %475
    %477 = vrot.lane.b32.xlu0 %v472, 32
    %v478 = vpop.permute.xlu0 %477
    %v481 = vadd.f32 %v461, %v476
    %v482 = vadd.f32 %v462, %v478
    %v483 = vtanh.pop %v481
    %v484 = vtanh.pop %v482
    %487 = vrot.lane.b32.xlu0 %v483, 32
    %v488 = vpop.permute.xlu0 %487
    %489 = vrot.lane.b32.xlu0 %v484, 32
    %v490 = vpop.permute.xlu0 %489
    %v493 = vmul.f32 %v443, %v488
    %v494 = vmul.f32 %v458, %v490
    %497 = vrot.lane.b32.xlu0 %v493, 64
    %v498 = vpop.permute.xlu0 %497
    %499 = vrot.lane.b32.xlu0 %v494, 64
    %v500 = vpop.permute.xlu0 %499
    %503 = vst.msk [vmem:[#allocation4 + $0x3] sm:$0x1] %vm147, %v498
    %504 = vst.msk [vmem:[#allocation4 + $0xb] sm:$0x1] %vm147, %v500
    %v505 = vld [vmem:[%s0 + $0x4] sm:$0x1]
    %v506 = vld [vmem:[%s0 + $0xc] sm:$0x1]
    %v507 = vrot.slane %v494, 7
    %v508 = vsel %vm153, %v507, %v493
    %509 = vrot.lane.b32.xlu0 %v508, 64
    %v510 = vpop.permute.xlu0 %509
    %v511 = vsel %vm27, %v510, 0
    %513 = vmatpush.msra.mxu0 0.0
    %514 = vmatpush.msra.mxu0 0.0
    %515 = vmatpush.msra.mxu0 0.0
    %516 = vmatpush.msra.mxu0 0.0
    %517 = vmatpush.msra.mxu0 0.0
    %518 = vmatpush.msra.mxu0 0.0
    %519 = vmatpush.msra.mxu0 0.0
    %520 = vmatpush.msra.mxu0 0.0
    %521 = vmatpush.msra.mxu0 0.0
    %522 = vmatpush.msra.mxu0 0.0
    %523 = vmatpush.msra.mxu0 0.0
    %524 = vmatpush.msra.mxu0 0.0
    %525 = vmatpush.msra.mxu0 %v22
    %526 = vmatpush.msra.mxu0 %v21
    %527 = vmatpush.msra.mxu0 %v20
    %528 = vmatpush.msra.mxu0 %v19
    %529 = vmatmul.f32.gmra.mxu0 %v511
    %v530 = vpop.f32.mrf.mxu0
    %v531 = vadd.f32 0.0, %v530
    %532 = vdwg.mxu0
    %v534 = vrot.slane %v531, 1
    %v537 = vadd.f32 %v505, %v531
    %v538 = vadd.f32 %v506, %v534
    %v539 = vxor.u32 %v537, 2147483648
    %v540 = vxor.u32 %v538, 2147483648
    %v541 = vmul.f32 %v539, 1.442695
    %v542 = vpow.pop %v541
    %v543 = vmul.f32 %v540, 1.442695
    %v544 = vpow.pop %v543
    %v545 = vadd.f32 %v542, 1.0
    %v546 = vadd.f32 %v544, 1.0
    %v547 = vrcp.pop %v545
    %v548 = vmul.f32 %v545, %v547
    %v549 = vsub.f32 1.0, %v548
    %v550 = vmul.f32 %v547, %v549
    %v551 = vadd.f32 %v547, %v550
    %vm552 = vweird.f32 %v545
    %vm553 = vweird.f32 %v547
    %vm554 = vmor %vm552, %vm553
    %v555 = vsel %vm554, %v547, %v551
    %v556 = vand.u32 2147483647, %v545
    %vm557 = vcmp.eq.f32.partialorder %v556, 8.507059e+37
    %v558 = vand.u32 %v545, 2147483648
    %v559 = vor.u32 1.1754944e-38, %v558
    %v560 = vsel %vm557, %v559, %v555
    %v561 = vmul.f32 1.0, %v560
    %v562 = vrcp.pop %v546
    %v563 = vmul.f32 %v546, %v562
    %v564 = vsub.f32 1.0, %v563
    %v565 = vmul.f32 %v562, %v564
    %v566 = vadd.f32 %v562, %v565
    %vm567 = vweird.f32 %v546
    %vm568 = vweird.f32 %v562
    %vm569 = vmor %vm567, %vm568
    %v570 = vsel %vm569, %v562, %v566
    %v571 = vand.u32 2147483647, %v546
    %vm572 = vcmp.eq.f32.partialorder %v571, 8.507059e+37
    %v573 = vand.u32 %v546, 2147483648
    %v574 = vor.u32 1.1754944e-38, %v573
    %v575 = vsel %vm572, %v574, %v570
    %v576 = vmul.f32 1.0, %v575
    %v577 = vtanh.pop %v537
    %v578 = vtanh.pop %v538
    %v579 = vmul.f32 %v561, %v481
    %v580 = vmul.f32 %v576, %v482
    %583 = vrot.lane.b32.xlu0 %v577, 32
    %v584 = vpop.permute.xlu0 %583
    %585 = vrot.lane.b32.xlu0 %v578, 32
    %v586 = vpop.permute.xlu0 %585
    %v589 = vmul.f32 %v561, %v584
    %v590 = vmul.f32 %v576, %v586
    %593 = vrot.lane.b32.xlu0 %v589, 32
    %v594 = vpop.permute.xlu0 %593
    %595 = vrot.lane.b32.xlu0 %v590, 32
    %v596 = vpop.permute.xlu0 %595
    %v599 = vadd.f32 %v579, %v594
    %v600 = vadd.f32 %v580, %v596
    %v601 = vtanh.pop %v599
    %v602 = vtanh.pop %v600
    %605 = vrot.lane.b32.xlu0 %v601, 32
    %v606 = vpop.permute.xlu0 %605
    %607 = vrot.lane.b32.xlu0 %v602, 32
    %v608 = vpop.permute.xlu0 %607
    %v611 = vmul.f32 %v561, %v606
    %v612 = vmul.f32 %v576, %v608
    %615 = vrot.lane.b32.xlu0 %v611, 64
    %v616 = vpop.permute.xlu0 %615
    %617 = vrot.lane.b32.xlu0 %v612, 64
    %v618 = vpop.permute.xlu0 %617
    %621 = vst.msk [vmem:[#allocation4 + $0x4] sm:$0x1] %vm147, %v616
    %622 = vst.msk [vmem:[#allocation4 + $0xc] sm:$0x1] %vm147, %v618
    %v623 = vld [vmem:[%s0 + $0x5] sm:$0x1]
    %v624 = vld [vmem:[%s0 + $0xd] sm:$0x1]
    %v625 = vrot.slane %v612, 7
    %v626 = vsel %vm153, %v625, %v611
    %627 = vrot.lane.b32.xlu0 %v626, 64
    %v628 = vpop.permute.xlu0 %627
    %v629 = vsel %vm27, %v628, 0
    %631 = vmatpush.msra.mxu0 0.0
    %632 = vmatpush.msra.mxu0 0.0
    %633 = vmatpush.msra.mxu0 0.0
    %634 = vmatpush.msra.mxu0 0.0
    %635 = vmatpush.msra.mxu0 0.0
    %636 = vmatpush.msra.mxu0 0.0
    %637 = vmatpush.msra.mxu0 0.0
    %638 = vmatpush.msra.mxu0 0.0
    %639 = vmatpush.msra.mxu0 0.0
    %640 = vmatpush.msra.mxu0 0.0
    %641 = vmatpush.msra.mxu0 0.0
    %642 = vmatpush.msra.mxu0 0.0
    %643 = vmatpush.msra.mxu0 %v22
    %644 = vmatpush.msra.mxu0 %v21
    %645 = vmatpush.msra.mxu0 %v20
    %646 = vmatpush.msra.mxu0 %v19
    %647 = vmatmul.f32.gmra.mxu0 %v629
    %v648 = vpop.f32.mrf.mxu0
    %v649 = vadd.f32 0.0, %v648
    %650 = vdwg.mxu0
    %v652 = vrot.slane %v649, 1
    %v655 = vadd.f32 %v623, %v649
    %v656 = vadd.f32 %v624, %v652
    %v657 = vxor.u32 %v655, 2147483648
    %v658 = vxor.u32 %v656, 2147483648
    %v659 = vmul.f32 %v657, 1.442695
    %v660 = vpow.pop %v659
    %v661 = vmul.f32 %v658, 1.442695
    %v662 = vpow.pop %v661
    %v663 = vadd.f32 %v660, 1.0
    %v664 = vadd.f32 %v662, 1.0
    %v665 = vrcp.pop %v663
    %v666 = vmul.f32 %v663, %v665
    %v667 = vsub.f32 1.0, %v666
    %v668 = vmul.f32 %v665, %v667
    %v669 = vadd.f32 %v665, %v668
    %vm670 = vweird.f32 %v663
    %vm671 = vweird.f32 %v665
    %vm672 = vmor %vm670, %vm671
    %v673 = vsel %vm672, %v665, %v669
    %v674 = vand.u32 2147483647, %v663
    %vm675 = vcmp.eq.f32.partialorder %v674, 8.507059e+37
    %v676 = vand.u32 %v663, 2147483648
    %v677 = vor.u32 1.1754944e-38, %v676
    %v678 = vsel %vm675, %v677, %v673
    %v679 = vmul.f32 1.0, %v678
    %v680 = vrcp.pop %v664
    %v681 = vmul.f32 %v664, %v680
    %v682 = vsub.f32 1.0, %v681
    %v683 = vmul.f32 %v680, %v682
    %v684 = vadd.f32 %v680, %v683
    %vm685 = vweird.f32 %v664
    %vm686 = vweird.f32 %v680
    %vm687 = vmor %vm685, %vm686
    %v688 = vsel %vm687, %v680, %v684
    %v689 = vand.u32 2147483647, %v664
    %vm690 = vcmp.eq.f32.partialorder %v689, 8.507059e+37
    %v691 = vand.u32 %v664, 2147483648
    %v692 = vor.u32 1.1754944e-38, %v691
    %v693 = vsel %vm690, %v692, %v688
    %v694 = vmul.f32 1.0, %v693
    %v695 = vtanh.pop %v655
    %v696 = vtanh.pop %v656
    %v697 = vmul.f32 %v679, %v599
    %v698 = vmul.f32 %v694, %v600
    %701 = vrot.lane.b32.xlu0 %v695, 32
    %v702 = vpop.permute.xlu0 %701
    %703 = vrot.lane.b32.xlu0 %v696, 32
    %v704 = vpop.permute.xlu0 %703
    %v707 = vmul.f32 %v679, %v702
    %v708 = vmul.f32 %v694, %v704
    %711 = vrot.lane.b32.xlu0 %v707, 32
    %v712 = vpop.permute.xlu0 %711
    %713 = vrot.lane.b32.xlu0 %v708, 32
    %v714 = vpop.permute.xlu0 %713
    %v717 = vadd.f32 %v697, %v712
    %v718 = vadd.f32 %v698, %v714
    %v719 = vtanh.pop %v717
    %v720 = vtanh.pop %v718
    %723 = vrot.lane.b32.xlu0 %v719, 32
    %v724 = vpop.permute.xlu0 %723
    %725 = vrot.lane.b32.xlu0 %v720, 32
    %v726 = vpop.permute.xlu0 %725
    %v729 = vmul.f32 %v679, %v724
    %v730 = vmul.f32 %v694, %v726
    %733 = vrot.lane.b32.xlu0 %v729, 64
    %v734 = vpop.permute.xlu0 %733
    %735 = vrot.lane.b32.xlu0 %v730, 64
    %v736 = vpop.permute.xlu0 %735
    %739 = vst.msk [vmem:[#allocation4 + $0x5] sm:$0x1] %vm147, %v734
    %740 = vst.msk [vmem:[#allocation4 + $0xd] sm:$0x1] %vm147, %v736
    %v741 = vld [vmem:[%s0 + $0x6] sm:$0x1]
    %v742 = vld [vmem:[%s0 + $0xe] sm:$0x1]
    %v743 = vrot.slane %v730, 7
    %v744 = vsel %vm153, %v743, %v729
    %745 = vrot.lane.b32.xlu0 %v744, 64
    %v746 = vpop.permute.xlu0 %745
    %v747 = vsel %vm27, %v746, 0
    %749 = vmatpush.msra.mxu0 0.0
    %750 = vmatpush.msra.mxu0 0.0
    %751 = vmatpush.msra.mxu0 0.0
    %752 = vmatpush.msra.mxu0 0.0
    %753 = vmatpush.msra.mxu0 0.0
    %754 = vmatpush.msra.mxu0 0.0
    %755 = vmatpush.msra.mxu0 0.0
    %756 = vmatpush.msra.mxu0 0.0
    %757 = vmatpush.msra.mxu0 0.0
    %758 = vmatpush.msra.mxu0 0.0
    %759 = vmatpush.msra.mxu0 0.0
    %760 = vmatpush.msra.mxu0 0.0
    %761 = vmatpush.msra.mxu0 %v22
    %762 = vmatpush.msra.mxu0 %v21
    %763 = vmatpush.msra.mxu0 %v20
    %764 = vmatpush.msra.mxu0 %v19
    %765 = vmatmul.f32.gmra.mxu0 %v747
    %v766 = vpop.f32.mrf.mxu0
    %v767 = vadd.f32 0.0, %v766
    %768 = vdwg.mxu0
    %v770 = vrot.slane %v767, 1
    %v773 = vadd.f32 %v741, %v767
    %v774 = vadd.f32 %v742, %v770
    %v775 = vxor.u32 %v773, 2147483648
    %v776 = vxor.u32 %v774, 2147483648
    %v777 = vmul.f32 %v775, 1.442695
    %v778 = vpow.pop %v777
    %v779 = vmul.f32 %v776, 1.442695
    %v780 = vpow.pop %v779
    %v781 = vadd.f32 %v778, 1.0
    %v782 = vadd.f32 %v780, 1.0
    %v783 = vrcp.pop %v781
    %v784 = vmul.f32 %v781, %v783
    %v785 = vsub.f32 1.0, %v784
    %v786 = vmul.f32 %v783, %v785
    %v787 = vadd.f32 %v783, %v786
    %vm788 = vweird.f32 %v781
    %vm789 = vweird.f32 %v783
    %vm790 = vmor %vm788, %vm789
    %v791 = vsel %vm790, %v783, %v787
    %v792 = vand.u32 2147483647, %v781
    %vm793 = vcmp.eq.f32.partialorder %v792, 8.507059e+37
    %v794 = vand.u32 %v781, 2147483648
    %v795 = vor.u32 1.1754944e-38, %v794
    %v796 = vsel %vm793, %v795, %v791
    %v797 = vmul.f32 1.0, %v796
    %v798 = vrcp.pop %v782
    %v799 = vmul.f32 %v782, %v798
    %v800 = vsub.f32 1.0, %v799
    %v801 = vmul.f32 %v798, %v800
    %v802 = vadd.f32 %v798, %v801
    %vm803 = vweird.f32 %v782
    %vm804 = vweird.f32 %v798
    %vm805 = vmor %vm803, %vm804
    %v806 = vsel %vm805, %v798, %v802
    %v807 = vand.u32 2147483647, %v782
    %vm808 = vcmp.eq.f32.partialorder %v807, 8.507059e+37
    %v809 = vand.u32 %v782, 2147483648
    %v810 = vor.u32 1.1754944e-38, %v809
    %v811 = vsel %vm808, %v810, %v806
    %v812 = vmul.f32 1.0, %v811
    %v813 = vtanh.pop %v773
    %v814 = vtanh.pop %v774
    %v815 = vmul.f32 %v797, %v717
    %v816 = vmul.f32 %v812, %v718
    %819 = vrot.lane.b32.xlu0 %v813, 32
    %v820 = vpop.permute.xlu0 %819
    %821 = vrot.lane.b32.xlu0 %v814, 32
    %v822 = vpop.permute.xlu0 %821
    %v825 = vmul.f32 %v797, %v820
    %v826 = vmul.f32 %v812, %v822
    %829 = vrot.lane.b32.xlu0 %v825, 32
    %v830 = vpop.permute.xlu0 %829
    %831 = vrot.lane.b32.xlu0 %v826, 32
    %v832 = vpop.permute.xlu0 %831
    %v835 = vadd.f32 %v815, %v830
    %v836 = vadd.f32 %v816, %v832
    %v837 = vtanh.pop %v835
    %v838 = vtanh.pop %v836
    %841 = vrot.lane.b32.xlu0 %v837, 32
    %v842 = vpop.permute.xlu0 %841
    %843 = vrot.lane.b32.xlu0 %v838, 32
    %v844 = vpop.permute.xlu0 %843
    %v847 = vmul.f32 %v797, %v842
    %v848 = vmul.f32 %v812, %v844
    %851 = vrot.lane.b32.xlu0 %v847, 64
    %v852 = vpop.permute.xlu0 %851
    %853 = vrot.lane.b32.xlu0 %v848, 64
    %v854 = vpop.permute.xlu0 %853
    %857 = vst.msk [vmem:[#allocation4 + $0x6] sm:$0x1] %vm147, %v852
    %858 = vst.msk [vmem:[#allocation4 + $0xe] sm:$0x1] %vm147, %v854
    %v859 = vld [vmem:[%s0 + $0x7] sm:$0x1]
    %v860 = vld [vmem:[%s0 + $0xf] sm:$0x1]
    %v861 = vrot.slane %v848, 7
    %v862 = vsel %vm153, %v861, %v847
    %863 = vrot.lane.b32.xlu0 %v862, 64
    %v864 = vpop.permute.xlu0 %863
    %v865 = vsel %vm27, %v864, 0
    %867 = vmatpush.msra.mxu0 0.0
    %868 = vmatpush.msra.mxu0 0.0
    %869 = vmatpush.msra.mxu0 0.0
    %870 = vmatpush.msra.mxu0 0.0
    %871 = vmatpush.msra.mxu0 0.0
    %872 = vmatpush.msra.mxu0 0.0
    %873 = vmatpush.msra.mxu0 0.0
    %874 = vmatpush.msra.mxu0 0.0
    %875 = vmatpush.msra.mxu0 0.0
    %876 = vmatpush.msra.mxu0 0.0
    %877 = vmatpush.msra.mxu0 0.0
    %878 = vmatpush.msra.mxu0 0.0
    %879 = vmatpush.msra.mxu0 %v22
    %880 = vmatpush.msra.mxu0 %v21
    %881 = vmatpush.msra.mxu0 %v20
    %882 = vmatpush.msra.mxu0 %v19
    %883 = vmatmul.f32.gmra.mxu0 %v865
    %v884 = vpop.f32.mrf.mxu0
    %v885 = vadd.f32 0.0, %v884
    %886 = vdwg.mxu0
    %v888 = vrot.slane %v885, 1
    %v891 = vadd.f32 %v859, %v885
    %v892 = vadd.f32 %v860, %v888
    %v893 = vxor.u32 %v891, 2147483648
    %v894 = vxor.u32 %v892, 2147483648
    %v895 = vmul.f32 %v893, 1.442695
    %v896 = vpow.pop %v895
    %v897 = vmul.f32 %v894, 1.442695
    %v898 = vpow.pop %v897
    %v899 = vadd.f32 %v896, 1.0
    %v900 = vadd.f32 %v898, 1.0
    %v901 = vrcp.pop %v899
    %v902 = vmul.f32 %v899, %v901
    %v903 = vsub.f32 1.0, %v902
    %v904 = vmul.f32 %v901, %v903
    %v905 = vadd.f32 %v901, %v904
    %vm906 = vweird.f32 %v899
    %vm907 = vweird.f32 %v901
    %vm908 = vmor %vm906, %vm907
    %v909 = vsel %vm908, %v901, %v905
    %v910 = vand.u32 2147483647, %v899
    %vm911 = vcmp.eq.f32.partialorder %v910, 8.507059e+37
    %v912 = vand.u32 %v899, 2147483648
    %v913 = vor.u32 1.1754944e-38, %v912
    %v914 = vsel %vm911, %v913, %v909
    %v915 = vmul.f32 1.0, %v914
    %v916 = vrcp.pop %v900
    %v917 = vmul.f32 %v900, %v916
    %v918 = vsub.f32 1.0, %v917
    %v919 = vmul.f32 %v916, %v918
    %v920 = vadd.f32 %v916, %v919
    %vm921 = vweird.f32 %v900
    %vm922 = vweird.f32 %v916
    %vm923 = vmor %vm921, %vm922
    %v924 = vsel %vm923, %v916, %v920
    %v925 = vand.u32 2147483647, %v900
    %vm926 = vcmp.eq.f32.partialorder %v925, 8.507059e+37
    %v927 = vand.u32 %v900, 2147483648
    %v928 = vor.u32 1.1754944e-38, %v927
    %v929 = vsel %vm926, %v928, %v924
    %v930 = vmul.f32 1.0, %v929
    %v931 = vtanh.pop %v891
    %v932 = vtanh.pop %v892
    %v933 = vmul.f32 %v915, %v835
    %v934 = vmul.f32 %v930, %v836
    %937 = vrot.lane.b32.xlu0 %v931, 32
    %v938 = vpop.permute.xlu0 %937
    %939 = vrot.lane.b32.xlu0 %v932, 32
    %v940 = vpop.permute.xlu0 %939
    %v943 = vmul.f32 %v915, %v938
    %v944 = vmul.f32 %v930, %v940
    %947 = vrot.lane.b32.xlu0 %v943, 32
    %v948 = vpop.permute.xlu0 %947
    %949 = vrot.lane.b32.xlu0 %v944, 32
    %v950 = vpop.permute.xlu0 %949
    %v953 = vadd.f32 %v933, %v948
    %v954 = vadd.f32 %v934, %v950
    %v955 = vtanh.pop %v953
    %v956 = vtanh.pop %v954
    %959 = vrot.lane.b32.xlu0 %v955, 32
    %v960 = vpop.permute.xlu0 %959
    %961 = vrot.lane.b32.xlu0 %v956, 32
    %v962 = vpop.permute.xlu0 %961
    %v965 = vmul.f32 %v915, %v960
    %v966 = vmul.f32 %v930, %v962
    %969 = vrot.lane.b32.xlu0 %v965, 64
    %v970 = vpop.permute.xlu0 %969
    %971 = vrot.lane.b32.xlu0 %v966, 64
    %v972 = vpop.permute.xlu0 %971
    %975 = vst.msk [vmem:[#allocation4 + $0x7] sm:$0x1] %vm147, %v970
    %976 = vst.msk [vmem:[#allocation4 + $0xf] sm:$0x1] %vm147, %v972
    %v977 = vrot.slane %v966, 7
    %v978 = vsel %vm153, %v977, %v965
    %979 = vrot.lane.b32.xlu0 %v978, 64
    %v980 = vpop.permute.xlu0 %979
    %vm982 = vcmask 254976
    %983 = vst.msk [vmem:[#allocation2] sm:$0x3] %vm982, %v980
    %v986 = vrot.slane %v954, 7
    %v987 = vsel %vm153, %v986, %v953
    %988 = vrot.lane.b32.xlu0 %v987, 96
    %v989 = vpop.permute.xlu0 %988
    %991 = vst.msk [vmem:[#allocation3] sm:$0x3] %vm982, %v989
    // Predicated region
    $region14: #{lstm_forward.1} parent=1 // pred_check
      _
    $region15: #{lstm_forward.1} parent=1 // pred_check_branch
      %993 = sbr.rel (0) target = $region17
    $region16: #{lstm_forward.1} parent=1 // pred_region
      %995 = vsyncadd [#allocation5], 0
      %s996 = sshll.u32 [#allocation4], 4
      %s997 = int_to_ptr.vmem [resolvable:$true] %s996
      %s998 = sshll.u32 %s2, 4
      %s999 = int_to_ptr.hbm [resolvable:$true] %s998
      %1004 = dma.vmem_to_hbm [thread:$0]  %s997, 256, %s999, [#allocation5], 128, 128, 8
    $region17: #{lstm_forward.1} parent=1 // pred_fallthru
      _
    // Predicated region
    $region18: #{lstm_forward.1} parent=1 // pred_check
      _
    $region19: #{lstm_forward.1} parent=1 // pred_check_branch
      %1006 = sbr.rel (0) target = $region21
    $region20: #{lstm_forward.1} parent=1 // pred_region
      %1008 = dma.done [#allocation5], 256
    $region21: #{lstm_forward.1} parent=1 // pred_fallthru
      _
    %1009 = vsyncpa [#allocation5], 1

</llo_original>
